<compile_context>
chip_gen: v7x
topology: tpu7x:2x2x1
jax: 0.10.0
libtpu: 0.0.40
codegen_flags: <defaults>
</compile_context>

<pallas_src>
import jax
import jax.numpy as jnp
from jax.experimental import pallas as pl
from jax.experimental.pallas import tpu as pltpu


def _round_up(x, m):
    return ((x + m - 1) // m) * m


def _patch_embed_kernel(p_ref, w_ref, b_ref, pos_ref, o_ref):
    # p_ref:   (TM, K)  row tile of flattened patches
    # w_ref:   (K, E)   flattened conv weight (resident across grid)
    # b_ref:   (1, E)   conv bias             (resident across grid)
    # pos_ref: (TM, E)  positional embeddings for these rows
    # o_ref:   (TM, E)  output tile
    acc = jnp.dot(p_ref[...], w_ref[...],
                  preferred_element_type=jnp.float32)          # MXU, f32 acc
    o_ref[...] = (acc + b_ref[...] + pos_ref[...]).astype(o_ref.dtype)


def patch_embedding(x, conv_w, conv_b, cls_token, positions, patch_size,
                    row_tile=256, matmul_dtype=None):
    """x: (B, C, H, W) float32 (NCHW, like PyTorch). Returns (B, N+1, E)."""
    B, C, H, W = x.shape
    E = conv_w.shape[0]
    P = patch_size
    nH, nW = H // P, W // P
    N = nH * nW
    K = C * P * P
    BN = B * N

    # im2col: (B, C, nH, P, nW, P) -> (B, nH, nW, C, P, P) -> (B*N, K)
    # TODO(synk): for NHWC inputs this transpose becomes a near-free swap;
    # with NCHW we rely on allow_input_fusion to fold it into the input DMA.
    patches = x.reshape(B, C, nH, P, nW, P)
    patches = patches.transpose(0, 2, 4, 1, 3, 5).reshape(BN, K)

    # Conv weight (E, C, P, P) -> (K, E) so that patches @ W == conv output.
    w_flat = conv_w.reshape(E, K).T
    bias = conv_b.reshape(1, E).astype(jnp.float32)

    # Per-row positional embeddings for the patch rows (row r = b*N + n
    # gets positions[n+1]); tiled across batch so any row tiling is correct.
    pos_body = jnp.tile(positions[1:], (B, 1)).astype(jnp.float32)  # (BN, E)

    if matmul_dtype is not None:           # bf16 MXU path for v6e/v7x scale
        patches = patches.astype(matmul_dtype)
        w_flat = w_flat.astype(matmul_dtype)

    # Row tiling: fill the MXU row dim (up to `row_tile` rows per step) and
    # pad the row count so every grid step sees a full, aligned tile.
    TM = min(row_tile, _round_up(BN, 8))
    BN_pad = _round_up(BN, TM)
    if BN_pad != BN:
        patches = jnp.pad(patches, ((0, BN_pad - BN), (0, 0)))
        pos_body = jnp.pad(pos_body, ((0, BN_pad - BN), (0, 0)))

    grid = (BN_pad // TM,)

    out_body = pl.pallas_call(
        _patch_embed_kernel,
        out_shape=jax.ShapeDtypeStruct((BN_pad, E), jnp.float32),
        grid_spec=pltpu.PrefetchScalarGridSpec(
            num_scalar_prefetch=0,
            grid=grid,
            in_specs=[
                pl.BlockSpec((TM, K), lambda i: (i, 0)),   # patches row tile
                pl.BlockSpec((K, E), lambda i: (0, 0)),    # W resident
                pl.BlockSpec((1, E), lambda i: (0, 0)),    # bias resident
                pl.BlockSpec((TM, E), lambda i: (i, 0)),   # pos row tile
            ],
            out_specs=pl.BlockSpec((TM, E), lambda i: (i, 0)),
        ),
        compiler_params=pltpu.CompilerParams(
            dimension_semantics=("parallel",),
            allow_input_fusion=[True, False, False, False],
            vmem_limit_bytes=64 * 1024 * 1024,
        ),
    )(patches, w_flat, bias, pos_body)

    out_body = out_body[:BN].reshape(B, N, E)

    # cls-token prepend outside the kernel: one cheap XLA broadcast + concat.
    cls_row = (cls_token.reshape(1, E) + positions[0:1, :]).astype(jnp.float32)
    cls_rows = jnp.broadcast_to(cls_row[None], (B, 1, E))
    return jnp.concatenate([cls_rows, out_body], axis=1)     # (B, N+1, E)


def reference(x, conv_w, conv_b, cls_token, positions, patch_size):
    """Pure-JAX reference replicating the PyTorch module semantics."""
    B, C, H, W = x.shape
    E = conv_w.shape[0]
    P = patch_size
    nH, nW = H // P, W // P
    N = nH * nW
    K = C * P * P
    patches = x.reshape(B, C, nH, P, nW, P).transpose(0, 2, 4, 1, 3, 5)
    patches = patches.reshape(B, N, K)
    proj = patches @ conv_w.reshape(E, K).T + conv_b  # (B, N, E)
    cls = jnp.broadcast_to(cls_token.reshape(1, 1, E), (B, 1, E))
    out = jnp.concatenate([cls, proj], axis=1)
    return out + positions[None]


if __name__ == "__main__":
    # Small shapes consistent with the module: in_channels=4, patch_size=4,
    # emb_size=32, img_size=16 -> num_patches = (16//4)^2 = 16, seq = 17.
    B, C, IMG, P, E = 2, 4, 16, 4, 32
    N = (IMG // P) ** 2

    key = jax.random.PRNGKey(0)
    kx, kw, kb, kc, kp = jax.random.split(key, 5)
    x = jax.random.normal(kx, (B, C, IMG, IMG), dtype=jnp.float32)
    conv_w = jax.random.normal(kw, (E, C, P, P), dtype=jnp.float32) * 0.02
    conv_b = jax.random.normal(kb, (E,), dtype=jnp.float32) * 0.02
    cls_token = jax.random.normal(kc, (1, 1, E), dtype=jnp.float32)
    positions = jax.random.normal(kp, (N + 1, E), dtype=jnp.float32)

    out = patch_embedding(x, conv_w, conv_b, cls_token, positions, P)
    out = jax.block_until_ready(out)

    ref = reference(x, conv_w, conv_b, cls_token, positions, P)
    assert out.shape == (B, N + 1, E), out.shape
    assert jnp.allclose(out, ref, atol=1e-4, rtol=1e-4), "mismatch vs reference"
    print("KERNEL_OK")
</pallas_src>

<mosaic_0001>
module attributes {stable_mosaic.version = 11 : i64} {
  func.func @_patch_embed_kernel(%arg0: i32, %arg1: memref<32x64xf32, #tpu.memory_space<vmem>>, %arg2: memref<64x32xf32, #tpu.memory_space<vmem>>, %arg3: memref<1x32xf32, #tpu.memory_space<vmem>>, %arg4: memref<32x32xf32, #tpu.memory_space<vmem>>, %arg5: memref<32x32xf32, #tpu.memory_space<vmem>>) attributes {dimension_semantics = [#tpu.dimension_semantics<parallel>], iteration_bounds = array<i64: 1>, scalar_prefetch = 0 : i64, scratch_operands = 0 : i64, tpu.core_type = #tpu.core_type<tc>, window_params = [{transform_indices = @transform_0, window_bounds = array<i64: 32, 64>}, {pipeline_mode = #tpu.pipeline_mode<synchronous>, transform_indices = @transform_1, window_bounds = array<i64: 64, 32>}, {pipeline_mode = #tpu.pipeline_mode<synchronous>, transform_indices = @transform_2, window_bounds = array<i64: 1, 32>}, {transform_indices = @transform_3, window_bounds = array<i64: 32, 32>}, {transform_indices = @transform_4, window_bounds = array<i64: 32, 32>}]} {
    %c0 = arith.constant 0 : index
    %c0_0 = arith.constant 0 : index
    %0 = vector.load %arg1[%c0, %c0_0] : memref<32x64xf32, #tpu.memory_space<vmem>>, vector<32x64xf32>
    %c0_1 = arith.constant 0 : index
    %c0_2 = arith.constant 0 : index
    %1 = vector.load %arg2[%c0_1, %c0_2] : memref<64x32xf32, #tpu.memory_space<vmem>>, vector<64x32xf32>
    %cst = arith.constant dense<0.000000e+00> : vector<32x32xf32>
    %2 = tpu.matmul %0, %1, %cst {dimension_numbers = #tpu.dot_dimension_numbers<[1], [0], [0], [1], [0, 0, 1, 1], [], []>} : vector<32x64xf32>, vector<64x32xf32>, vector<32x32xf32> -> vector<32x32xf32>
    %c0_3 = arith.constant 0 : index
    %c0_4 = arith.constant 0 : index
    %3 = vector.load %arg3[%c0_3, %c0_4] : memref<1x32xf32, #tpu.memory_space<vmem>>, vector<1x32xf32>
    %4 = vector.broadcast %3 : vector<1x32xf32> to vector<32x32xf32>
    %5 = arith.addf %2, %4 : vector<32x32xf32>
    %c0_5 = arith.constant 0 : index
    %c0_6 = arith.constant 0 : index
    %6 = vector.load %arg4[%c0_5, %c0_6] : memref<32x32xf32, #tpu.memory_space<vmem>>, vector<32x32xf32>
    %7 = arith.addf %5, %6 : vector<32x32xf32>
    %c0_7 = arith.constant 0 : index
    %c0_8 = arith.constant 0 : index
    %8 = vector.load %arg5[%c0_7, %c0_8] : memref<32x32xf32, #tpu.memory_space<vmem>>, vector<32x32xf32>
    tpu.vector_store %arg5[%c0_7, %c0_8], %7 {strides = array<i32>} : memref<32x32xf32, #tpu.memory_space<vmem>>, vector<32x32xf32>,
    return
  }
  func.func @transform_0(%arg0: i32) -> (i32, i32) {
    %c0_i32 = arith.constant 0 : i32
    %c0_i32_0 = arith.constant 0 : i32
    return %arg0, %c0_i32 : i32, i32
  }
  func.func @transform_1(%arg0: i32) -> (i32, i32) {
    %c0_i32 = arith.constant 0 : i32
    %c0_i32_0 = arith.constant 0 : i32
    %c0_i32_1 = arith.constant 0 : i32
    return %c0_i32, %c0_i32_0 : i32, i32
  }
  func.func @transform_2(%arg0: i32) -> (i32, i32) {
    %c0_i32 = arith.constant 0 : i32
    %c0_i32_0 = arith.constant 0 : i32
    %c0_i32_1 = arith.constant 0 : i32
    return %c0_i32, %c0_i32_0 : i32, i32
  }
  func.func @transform_3(%arg0: i32) -> (i32, i32) {
    %c0_i32 = arith.constant 0 : i32
    %c0_i32_0 = arith.constant 0 : i32
    return %arg0, %c0_i32 : i32, i32
  }
  func.func @transform_4(%arg0: i32) -> (i32, i32) {
    %c0_i32 = arith.constant 0 : i32
    %c0_i32_0 = arith.constant 0 : i32
    return %arg0, %c0_i32 : i32, i32
  }
}

</mosaic_0001>

<llo_original>
// kernel: tpu_custom_call.1
$region0: #{tpu_custom_call.1}
  #allocation0 [shape = 'u32[]', space=smem, size = 0x4, offset = 0x4, fixed_abs, tag = 'smem constant byte address 0x4 - core index']
  #allocation1 [shape = 'u32[144,128]{1,0:T(1,128)}', space=vmem, size = 0x12000, scoped, tag = 'internal scratch']
  %s0 = inlined_call_operand.hbm [shape: f32[32,64], index: 0, kind: input, shape index: {}]
  %s1 = inlined_call_operand.hbm [shape: f32[64,32], index: 1, kind: input, shape index: {}]
  %s2 = inlined_call_operand.hbm [shape: f32[1,32], index: 2, kind: input, shape index: {}]
  %s3 = inlined_call_operand.hbm [shape: f32[32,32], index: 3, kind: input, shape index: {}]
  %s4 = inlined_call_operand.hbm [shape: f32[32,32], index: 4, kind: output, shape index: {}]
  %s5 = sld [smem:[#allocation0]]
  $region42: #{tpu_custom_call.1} parent=0
    _
  %s7 = ssub.s32 1, %s5
  %s8 = scalar_select 0, %s7, %s5
  $region1: #{tpu_custom_call.1} parent=0
    #allocation2 [shape = 'u8[16384]{0}', space=vmem, size = 0x4000, scoped, tag = 'input window, operand 0, single buffered']
    #allocation3 [shape = 's32[1]{0}', space=sflag, size = 0x4, scoped, tag = 'scoped memory for tpu_custom_call.1']
    #allocation4 [shape = 's32[1]{0}', space=sflag, size = 0x4, scoped, tag = 'scoped memory for tpu_custom_call.1']
    #allocation5 [shape = 'u8[32768]{0}', space=vmem, size = 0x8000, scoped, tag = 'input window, operand 1, single buffered']
    #allocation6 [shape = 's32[1]{0}', space=sflag, size = 0x4, scoped, tag = 'scoped memory for tpu_custom_call.1']
    #allocation7 [shape = 'u8[512]{0}', space=vmem, size = 0x400, scoped, tag = 'input window, operand 2, single buffered']
    #allocation8 [shape = 'u8[16384]{0}', space=vmem, size = 0x4000, scoped, tag = 'input window, operand 3, single buffered']
    #allocation9 [shape = 's32[1]{0}', space=sflag, size = 0x4, scoped, tag = 'scoped memory for tpu_custom_call.1']
    #allocation10 [shape = 'u8[16384]{0}', space=vmem, size = 0x4000, scoped, tag = 'output window, operand 0, single buffered']
    %9 = vsyncpa [#allocation3], 0
    %10 = vsyncpa [#allocation6], 0
    %11 = vsyncpa [#allocation9], 0
    %12 = vsyncpa [#allocation4], 0
    // Predicated region
    $region2: #{tpu_custom_call.1} parent=1 // pred_check
      _
    $region3: #{tpu_custom_call.1} parent=1 // pred_check_branch
      %14 = sbr.rel (0) target = $region5
    $region4: #{tpu_custom_call.1} parent=1 // pred_region
      %s16 = ssub.s32 512, 512
      %17 = vsyncadd [#allocation3], %s16
      %s18 = sshll.u32 [#allocation2], 4
      %s19 = int_to_ptr.vmem [resolvable:$true] %s18
      %24 = dma.hbm_to_vmem [thread:$0]  %s0, 512, %s19, [#allocation3], 128, 128, 8
    $region5: #{tpu_custom_call.1} parent=1 // pred_fallthru
      _
    // Predicated region
    $region6: #{tpu_custom_call.1} parent=1 // pred_check
      _
    $region7: #{tpu_custom_call.1} parent=1 // pred_check_branch
      %26 = sbr.rel (0) target = $region9
    $region8: #{tpu_custom_call.1} parent=1 // pred_region
      %s28 = ssub.s32 1024, 1024
      %29 = vsyncadd [#allocation6], %s28
      %s30 = sshll.u32 [#allocation5], 4
      %s31 = int_to_ptr.vmem [resolvable:$true] %s30
      %36 = dma.hbm_to_vmem [thread:$0]  %s1, 1024, %s31, [#allocation6], 128, 128, 8
    $region9: #{tpu_custom_call.1} parent=1 // pred_fallthru
      _
    // Predicated region
    $region10: #{tpu_custom_call.1} parent=1 // pred_check
      _
    $region11: #{tpu_custom_call.1} parent=1 // pred_check_branch
      %38 = sbr.rel (0) target = $region13
    $region12: #{tpu_custom_call.1} parent=1 // pred_region
      %s40 = ssub.s32 16, 16
      %41 = vsyncadd [#allocation6], %s40
      %s43 = sshll.u32 [#allocation7], 4
      %s44 = int_to_ptr.vmem [resolvable:$true] %s43
      %46 = dma.hbm_to_vmem [thread:$0]  %s2, 16, %s44, [#allocation6]
    $region13: #{tpu_custom_call.1} parent=1 // pred_fallthru
      _
    // Predicated region
    $region14: #{tpu_custom_call.1} parent=1 // pred_check
      _
    $region15: #{tpu_custom_call.1} parent=1 // pred_check_branch
      %48 = sbr.rel (0) target = $region17
    $region16: #{tpu_custom_call.1} parent=1 // pred_region
      %s50 = ssub.s32 512, 512
      %51 = vsyncadd [#allocation9], %s50
      %s52 = sshll.u32 [#allocation8], 4
      %s53 = int_to_ptr.vmem [resolvable:$true] %s52
      %58 = dma.hbm_to_vmem [thread:$0]  %s3, 512, %s53, [#allocation9], 128, 128, 8
    $region17: #{tpu_custom_call.1} parent=1 // pred_fallthru
      _
    // Predicated region
    $region18: #{tpu_custom_call.1} parent=1 // pred_check
      _
    $region19: #{tpu_custom_call.1} parent=1 // pred_check_branch
      %60 = sbr.rel (0) target = $region21
    $region20: #{tpu_custom_call.1} parent=1 // pred_region
      %61 = dma.done [#allocation3], 512
    $region21: #{tpu_custom_call.1} parent=1 // pred_fallthru
      _
    // Predicated region
    $region22: #{tpu_custom_call.1} parent=1 // pred_check
      _
    $region23: #{tpu_custom_call.1} parent=1 // pred_check_branch
      %63 = sbr.rel (0) target = $region25
    $region24: #{tpu_custom_call.1} parent=1 // pred_region
      %64 = dma.done [#allocation6], 1024
    $region25: #{tpu_custom_call.1} parent=1 // pred_fallthru
      _
    // Predicated region
    $region26: #{tpu_custom_call.1} parent=1 // pred_check
      _
    $region27: #{tpu_custom_call.1} parent=1 // pred_check_branch
      %66 = sbr.rel (0) target = $region29
    $region28: #{tpu_custom_call.1} parent=1 // pred_region
      %67 = dma.done [#allocation6], 16
    $region29: #{tpu_custom_call.1} parent=1 // pred_fallthru
      _
    // Predicated region
    $region30: #{tpu_custom_call.1} parent=1 // pred_check
      _
    $region31: #{tpu_custom_call.1} parent=1 // pred_check_branch
      %69 = sbr.rel (0) target = $region33
    $region32: #{tpu_custom_call.1} parent=1 // pred_region
      %70 = dma.done [#allocation9], 512
    $region33: #{tpu_custom_call.1} parent=1 // pred_fallthru
      _
    %v71 = vld [vmem:[#allocation2] sm:$0xff]
    %v72 = vld [vmem:[#allocation2 + $0x8] sm:$0xff]
    %v73 = vld [vmem:[#allocation2 + $0x10] sm:$0xff]
    %v74 = vld [vmem:[#allocation2 + $0x18] sm:$0xff]
    %v75 = vld [vmem:[#allocation5] sm:$0xff]
    %v76 = vld [vmem:[#allocation5 + $0x8] sm:$0xff]
    %v77 = vld [vmem:[#allocation5 + $0x10] sm:$0xff]
    %v78 = vld [vmem:[#allocation5 + $0x18] sm:$0xff]
    %v79 = vld [vmem:[#allocation5 + $0x20] sm:$0xff]
    %v80 = vld [vmem:[#allocation5 + $0x28] sm:$0xff]
    %v81 = vld [vmem:[#allocation5 + $0x30] sm:$0xff]
    %v82 = vld [vmem:[#allocation5 + $0x38] sm:$0xff]
    %v83 = vld [vmem:[#allocation7] sm:$0x1]
    %v85 = vlaneseq
    %v86 = vshrl.u32 %v85, 7
    %v87 = vsub.s32 0, %v86
    %v88 = vrot.slane %v83, %v87
    %vm90 = vcmask 523264
    %v92 = vsel %vm90, %v71, 0
    %v95 = vsel %vm90, %v72, 0
    %v98 = vsel %vm90, %v73, 0
    %v101 = vsel %vm90, %v74, 0
    %103 = vmatprep.subr.mxu0 0.0
    %104 = vmatpush1.msra.mxu0 %v75
    %105 = vmatprep.subr.mxu0 0.0
    %106 = vmatpush1.msra.mxu0 %v76
    %107 = vmatprep.subr.mxu0 0.0
    %108 = vmatpush1.msra.mxu0 %v77
    %109 = vmatprep.subr.mxu0 0.0
    %110 = vmatpush1.msra.mxu0 %v78
    %111 = vmatprep.subr.mxu0 0.0
    %112 = vmatpush1.msra.mxu0 %v79
    %113 = vmatprep.subr.mxu0 0.0
    %114 = vmatpush1.msra.mxu0 %v80
    %115 = vmatprep.subr.mxu0 0.0
    %116 = vmatpush1.msra.mxu0 %v81
    %117 = vmatprep.subr.mxu0 0.0
    %118 = vmatpush1.msra.mxu0 %v82
    %119 = vmatprep.subr.mxu0 0.0
    %120 = vmatpush1.msra.mxu0 0.0
    %121 = vmatprep.subr.mxu0 0.0
    %122 = vmatpush1.msra.mxu0 0.0
    %123 = vmatprep.subr.mxu0 0.0
    %124 = vmatpush1.msra.mxu0 0.0
    %125 = vmatprep.subr.mxu0 0.0
    %126 = vmatpush1.msra.mxu0 0.0
    %127 = vmatprep.subr.mxu0 0.0
    %128 = vmatpush1.msra.mxu0 0.0
    %129 = vmatprep.subr.mxu0 0.0
    %130 = vmatpush1.msra.mxu0 0.0
    %131 = vmatprep.subr.mxu0 0.0
    %132 = vmatpush1.msra.mxu0 0.0
    %133 = vmatprep.subr.mxu0 0.0
    %134 = vmatpush1.msra.mxu0 0.0
    %135 = vmatprep.subr.mxu0 0.0
    %136 = vmatpush1.msra.mxu0 0.0
    %137 = vmatprep.subr.mxu0 0.0
    %138 = vmatpush1.msra.mxu0 0.0
    %139 = vmatprep.subr.mxu0 0.0
    %140 = vmatpush1.msra.mxu0 0.0
    %141 = vmatprep.subr.mxu0 0.0
    %142 = vmatpush1.msra.mxu0 0.0
    %143 = vmatprep.subr.mxu0 0.0
    %144 = vmatpush1.msra.mxu0 0.0
    %145 = vmatprep.subr.mxu0 0.0
    %146 = vmatpush1.msra.mxu0 0.0
    %147 = vmatprep.subr.mxu0 0.0
    %148 = vmatpush1.msra.mxu0 0.0
    %149 = vmatprep.subr.mxu0 0.0
    %150 = vmatpush1.msra.mxu0 0.0
    %151 = vmatprep.subr.mxu0 0.0
    %152 = vmatpush1.msra.mxu0 0.0
    %153 = vmatprep.subr.mxu0 0.0
    %154 = vmatpush1.msra.mxu0 0.0
    %155 = vmatprep.subr.mxu0 0.0
    %156 = vmatpush1.msra.mxu0 0.0
    %157 = vmatprep.subr.mxu0 0.0
    %158 = vmatpush1.msra.mxu0 0.0
    %159 = vmatprep.subr.mxu0 0.0
    %160 = vmatpush1.msra.mxu0 0.0
    %161 = vmatprep.subr.mxu0 0.0
    %162 = vmatpush1.msra.mxu0 0.0
    %163 = vmatprep.subr.mxu0 0.0
    %164 = vmatpush1.msra.mxu0 0.0
    %165 = vmatprep.subr.mxu0 0.0
    %166 = vmatpush1.msra.mxu0 0.0
    %167 = vmatprep.mubr.f32.mxu0 0.0
    %168 = vmatmul.mubr.f32.gmra.mrb[0].mxu0 %v92
    %v169 = vpop.f32.mrb[0].mxu0
    %v170 = vadd.f32 %v88, %v169
    %v171 = vpop.f32.mrb[0].mxu0
    %172 = vmatprep.mubr.f32.mxu0 0.0
    %173 = vmatmul.mubr.f32.gmra.mrb[0].mxu0 %v95
    %v174 = vpop.f32.mrb[0].mxu0
    %v175 = vadd.f32 %v88, %v174
    %v176 = vpop.f32.mrb[0].mxu0
    %177 = vmatprep.mubr.f32.mxu0 0.0
    %178 = vmatmul.mubr.f32.gmra.mrb[0].mxu0 %v98
    %v179 = vpop.f32.mrb[0].mxu0
    %v180 = vadd.f32 %v88, %v179
    %v181 = vpop.f32.mrb[0].mxu0
    %182 = vmatprep.mubr.f32.mxu0 0.0
    %183 = vmatmul.mubr.f32.gmra.mrb[0].mxu0 %v101
    %v184 = vpop.f32.mrb[0].mxu0
    %v185 = vadd.f32 %v88, %v184
    %v186 = vpop.f32.mrb[0].mxu0
    %187 = vdwg.mxu0
    %v188 = vld [vmem:[#allocation8] sm:$0xff]
    %v189 = vld [vmem:[#allocation8 + $0x8] sm:$0xff]
    %v190 = vld [vmem:[#allocation8 + $0x10] sm:$0xff]
    %v191 = vld [vmem:[#allocation8 + $0x18] sm:$0xff]
    %v192 = vadd.f32 %v170, %v188
    %v193 = vadd.f32 %v175, %v189
    %v194 = vadd.f32 %v180, %v190
    %v195 = vadd.f32 %v185, %v191
    %vm196 = vcmask 261120
    %197 = vst.msk [vmem:[#allocation10] sm:$0xff] %vm196, %v192
    %198 = vst.msk [vmem:[#allocation10 + $0x8] sm:$0xff] %vm196, %v193
    %199 = vst.msk [vmem:[#allocation10 + $0x10] sm:$0xff] %vm196, %v194
    %200 = vst.msk [vmem:[#allocation10 + $0x18] sm:$0xff] %vm196, %v195
    // Predicated region
    $region34: #{tpu_custom_call.1} parent=1 // pred_check
      _
    $region35: #{tpu_custom_call.1} parent=1 // pred_check_branch
      %202 = sbr.rel (0) target = $region37
    $region36: #{tpu_custom_call.1} parent=1 // pred_region
      %s204 = ssub.s32 512, 512
      %205 = vsyncadd [#allocation4], %s204
      %s206 = sshll.u32 [#allocation10], 4
      %s207 = int_to_ptr.vmem [resolvable:$true] %s206
      %212 = dma.vmem_to_hbm [thread:$0]  %s207, 512, %s4, [#allocation4], 128, 128, 8
    $region37: #{tpu_custom_call.1} parent=1 // pred_fallthru
      _
    // Predicated region
    $region38: #{tpu_custom_call.1} parent=1 // pred_check
      _
    $region39: #{tpu_custom_call.1} parent=1 // pred_check_branch
      %214 = sbr.rel (0) target = $region41
    $region40: #{tpu_custom_call.1} parent=1 // pred_region
      %215 = dma.done [#allocation4], 512
    $region41: #{tpu_custom_call.1} parent=1 // pred_fallthru
      _
    %216 = vsyncpa [#allocation3], 1
    %217 = vsyncpa [#allocation6], 1
    %218 = vsyncpa [#allocation9], 1
    %219 = vsyncpa [#allocation4], 1

</llo_original>
